<compile_context>
chip_gen: v6e
topology: v6e:2x2x1
jax: 0.10.0
libtpu: 0.0.40
codegen_flags: <defaults>
</compile_context>

<pallas_src>
import jax
import jax.numpy as jnp
from jax.experimental import pallas as pl
from jax.experimental.pallas import tpu as pltpu


def _round_up(x, m):
    return (x + m - 1) // m * m


# --------------------------------------------------------------- kernels ----

def _gru_kernel(x_ref, h_ref, wi_ref, wh_ref, bc_ref, bhn_ref, h_out_ref):
    """One GRU cell step, gate-fused (gate order r | z | n, each Hp wide).

    x   : [B, E+Hp] bf16  concat(embedded, context)   (concat done in wrapper)
    h   : [B, Hp]   f32   previous hidden, zero padded past H
    wi  : [E+Hp, 3Hp] bf16  input->gates
    wh  : [Hp, 3Hp]   bf16  hidden->gates
    bc  : [1, 3Hp] f32  b_ih with b_hh folded in for the r and z gates
    bhn : [1, Hp]  f32  b_hh for the n gate (applied inside r * (...))
    """
    Hp = h_out_ref.shape[1]
    h = h_ref[...]
    gi = jnp.dot(x_ref[...], wi_ref[...],
                 preferred_element_type=jnp.float32) + bc_ref[...]
    gh = jnp.dot(h.astype(wh_ref.dtype), wh_ref[...],
                 preferred_element_type=jnp.float32)
    r = jax.nn.sigmoid(gi[:, :Hp] + gh[:, :Hp])
    z = jax.nn.sigmoid(gi[:, Hp:2 * Hp] + gh[:, Hp:2 * Hp])
    n = jnp.tanh(gi[:, 2 * Hp:] + r * (gh[:, 2 * Hp:] + bhn_ref[...]))
    h_out_ref[...] = ((1.0 - z) * n + z * h).astype(h_out_ref.dtype)


def _fc_kernel(act_ref, wf_ref, bf_ref, pred_ref):
    """One vocab lane tile of fc_out: pred[:, tile] = act @ wf[:, tile] + b."""
    pred_ref[...] = (
        jnp.dot(act_ref[...], wf_ref[...], preferred_element_type=jnp.float32)
        + bf_ref[...]
    ).astype(pred_ref.dtype)


# ------------------------------------------------ one-time parameter prep ---

def prepare_decoder_params(params, *, fc_tile=2048):
    """Re-pack / pad / bf16-cast weights once at model load (not per step)."""
    emb_table = params["embedding"]           # [V, E]
    w_ih, w_hh = params["w_ih"], params["w_hh"]   # [3H, E+H], [3H, H]
    b_ih, b_hh = params["b_ih"], params["b_hh"]   # [3H], [3H]
    w_fc, b_fc = params["w_fc"], params["b_fc"]   # [V, E+2H], [V]

    V, E = emb_table.shape
    H = w_hh.shape[1]
    Hp = _round_up(H, 128)
    TN = min(fc_tile, _round_up(V, 128))      # lane tile (mult of 128)
    Vp = _round_up(V, TN)

    # GRU weights: gate-fused, lane padded per gate.
    w_ih_t = w_ih.T                           # [E+H, 3H]
    w_hh_t = w_hh.T                           # [H, 3H]
    wi = jnp.zeros((E + Hp, 3 * Hp), jnp.float32)
    wh = jnp.zeros((Hp, 3 * Hp), jnp.float32)
    for g in range(3):
        wi = wi.at[:E, g * Hp:g * Hp + H].set(w_ih_t[:E, g * H:(g + 1) * H])
        wi = wi.at[E:E + H, g * Hp:g * Hp + H].set(w_ih_t[E:, g * H:(g + 1) * H])
        wh = wh.at[:H, g * Hp:g * Hp + H].set(w_hh_t[:, g * H:(g + 1) * H])

    # Biases: fold b_ih+b_hh for r and z; keep b_hh_n separate (inside r*(.)).
    bc = jnp.zeros((1, 3 * Hp), jnp.float32)
    bc = bc.at[0, 0 * Hp:0 * Hp + H].set(b_ih[:H] + b_hh[:H])
    bc = bc.at[0, 1 * Hp:1 * Hp + H].set(b_ih[H:2 * H] + b_hh[H:2 * H])
    bc = bc.at[0, 2 * Hp:2 * Hp + H].set(b_ih[2 * H:])
    bhn = jnp.zeros((1, Hp), jnp.float32).at[0, :H].set(b_hh[2 * H:])

    # fc_out weight: [V, E+2H] -> transposed, padded [E+2Hp, Vp]
    # row layout matches the wrapper's act = concat(emb, h_new_pad, ctx_pad).
    w_fc_t = w_fc.T                           # [E+2H, V]
    wf = jnp.zeros((E + 2 * Hp, Vp), jnp.float32)
    wf = wf.at[:E, :V].set(w_fc_t[:E])                      # embedded rows
    wf = wf.at[E:E + H, :V].set(w_fc_t[E:E + H])            # hidden rows
    wf = wf.at[E + Hp:E + Hp + H, :V].set(w_fc_t[E + H:])   # context rows
    bf = jnp.zeros((1, Vp), jnp.float32).at[0, :V].set(b_fc)

    return {
        "emb_table": emb_table.astype(jnp.bfloat16),
        "wi": wi.astype(jnp.bfloat16), "wh": wh.astype(jnp.bfloat16),
        "bc": bc, "bhn": bhn,
        "wf": wf.astype(jnp.bfloat16), "bf": bf,
        "E": E, "H": H, "V": V, "Hp": Hp, "Vp": Vp, "TN": TN,
    }


# ---------------------------------------------------------------- forward ---

def decoder_forward(tokens, hidden, context, p):
    """tokens: [B] int32; hidden/context: [1, B, H] f32.
    Returns (prediction [B, V] f32, hidden [1, B, H] f32)."""
    E, H, V = p["E"], p["H"], p["V"]
    Hp, Vp, TN = p["Hp"], p["Vp"], p["TN"]

    emb = jnp.take(p["emb_table"], tokens, axis=0)        # [B, E] bf16
    # dropout: identity in eval mode (inference) -> no-op.
    h0 = hidden[0]                                        # [B, H] f32
    ctx = context[0]                                      # [B, H] f32
    B = emb.shape[0]

    pad_h = ((0, 0), (0, Hp - H))
    h_p = jnp.pad(h0, pad_h)                              # [B, Hp] f32
    ctx_bf = jnp.pad(ctx, pad_h).astype(jnp.bfloat16)     # [B, Hp] bf16
    x = jnp.concatenate([emb, ctx_bf], axis=1)            # [B, E+Hp] bf16

    def full(shape):
        return pl.BlockSpec(shape, lambda i: (0,) * len(shape))

    # ---- GRU cell (single step) --------------------------------------------
    h_new = pl.pallas_call(
        _gru_kernel,
        out_shape=jax.ShapeDtypeStruct((B, Hp), jnp.float32),
        grid=(1,),
        in_specs=[full((B, E + Hp)), full((B, Hp)),
                  full((E + Hp, 3 * Hp)), full((Hp, 3 * Hp)),
                  full((1, 3 * Hp)), full((1, Hp))],
        out_specs=full((B, Hp)),
        compiler_params=pltpu.CompilerParams(
            dimension_semantics=("arbitrary",)),
    )(x, h_p, p["wi"], p["wh"], p["bc"], p["bhn"])

    # ---- fc_out, tiled over the padded vocab lane dim ----------------------
    act = jnp.concatenate([emb, h_new.astype(jnp.bfloat16), ctx_bf],
                          axis=1)                         # [B, E+2Hp] bf16
    Kf = E + 2 * Hp
    pred_p = pl.pallas_call(
        _fc_kernel,
        out_shape=jax.ShapeDtypeStruct((B, Vp), jnp.float32),
        grid=(Vp // TN,),
        in_specs=[pl.BlockSpec((B, Kf), lambda i: (0, 0)),
                  pl.BlockSpec((Kf, TN), lambda i: (0, i)),
                  pl.BlockSpec((1, TN), lambda i: (0, i))],
        out_specs=pl.BlockSpec((B, TN), lambda i: (0, i)),
        compiler_params=pltpu.CompilerParams(
            dimension_semantics=("parallel",),
            vmem_limit_bytes=48 * 1024 * 1024),
    )(act, p["wf"], p["bf"])

    return pred_p[:, :V], h_new[:, :H][None]              # hidden -> [1,B,H]


# -------------------------------------------------------------- reference ---

def decoder_reference(tokens, hidden, context, params):
    """Pure-JAX f32 reference matching the PyTorch module (eval mode)."""
    emb = jnp.take(params["embedding"], tokens, axis=0)
    h = hidden[0]
    ctx = context[0]
    H = h.shape[1]
    x = jnp.concatenate([emb, ctx], axis=1)
    gi = x @ params["w_ih"].T + params["b_ih"]
    gh = h @ params["w_hh"].T + params["b_hh"]
    r = jax.nn.sigmoid(gi[:, :H] + gh[:, :H])
    z = jax.nn.sigmoid(gi[:, H:2 * H] + gh[:, H:2 * H])
    n = jnp.tanh(gi[:, 2 * H:] + r * gh[:, 2 * H:])
    h_new = (1.0 - z) * n + z * h
    out = jnp.concatenate([emb, h_new, ctx], axis=1)
    pred = out @ params["w_fc"].T + params["b_fc"]
    return pred, h_new[None]


if __name__ == "__main__":
    # small shapes consistent with the module
    B, E, H, V = 8, 32, 32, 64          # batch, emb_dim, hid_dim, output_dim
    key = jax.random.PRNGKey(0)
    keys = jax.random.split(key, 10)

    params = {
        "embedding": 0.1 * jax.random.normal(keys[0], (V, E), jnp.float32),
        "w_ih": 0.1 * jax.random.normal(keys[1], (3 * H, E + H), jnp.float32),
        "w_hh": 0.1 * jax.random.normal(keys[2], (3 * H, H), jnp.float32),
        "b_ih": 0.1 * jax.random.normal(keys[3], (3 * H,), jnp.float32),
        "b_hh": 0.1 * jax.random.normal(keys[4], (3 * H,), jnp.float32),
        "w_fc": 0.1 * jax.random.normal(keys[5], (V, E + 2 * H), jnp.float32),
        "b_fc": 0.1 * jax.random.normal(keys[6], (V,), jnp.float32),
    }

    tokens = jax.random.randint(keys[7], (B,), 0, V, dtype=jnp.int32)
    hidden = jax.random.normal(keys[8], (1, B, H), jnp.float32)
    context = jax.random.normal(keys[9], (1, B, H), jnp.float32)

    prepped = prepare_decoder_params(params)          # one-time, off hot path
    pred, h_out = decoder_forward(tokens, hidden, context, prepped)
    jax.block_until_ready((pred, h_out))

    pred_ref, h_ref = decoder_reference(tokens, hidden, context, params)
    assert pred.shape == (B, V) and h_out.shape == (1, B, H)
    # tolerance accounts for the deliberate bf16 weight quantization
    assert jnp.allclose(h_out, h_ref, atol=3e-2, rtol=3e-2), \
        float(jnp.max(jnp.abs(h_out - h_ref)))
    assert jnp.allclose(pred, pred_ref, atol=3e-2, rtol=3e-2), \
        float(jnp.max(jnp.abs(pred - pred_ref)))

    print("KERNEL_OK")
</pallas_src>

<mosaic_0001>
module attributes {stable_mosaic.version = 11 : i64} {
  func.func @_gru_kernel(%arg0: i32, %arg1: memref<8x160xbf16, #tpu.memory_space<vmem>>, %arg2: memref<8x128xf32, #tpu.memory_space<vmem>>, %arg3: memref<160x384xbf16, #tpu.memory_space<vmem>>, %arg4: memref<128x384xbf16, #tpu.memory_space<vmem>>, %arg5: memref<1x384xf32, #tpu.memory_space<vmem>>, %arg6: memref<1x128xf32, #tpu.memory_space<vmem>>, %arg7: memref<8x128xf32, #tpu.memory_space<vmem>>) attributes {dimension_semantics = [#tpu.dimension_semantics<arbitrary>], iteration_bounds = array<i64: 1>, scalar_prefetch = 0 : i64, scratch_operands = 0 : i64, tpu.core_type = #tpu.core_type<tc>, window_params = [{pipeline_mode = #tpu.pipeline_mode<synchronous>, transform_indices = @transform_0, window_bounds = array<i64: 8, 160>}, {pipeline_mode = #tpu.pipeline_mode<synchronous>, transform_indices = @transform_1, window_bounds = array<i64: 8, 128>}, {pipeline_mode = #tpu.pipeline_mode<synchronous>, transform_indices = @transform_2, window_bounds = array<i64: 160, 384>}, {pipeline_mode = #tpu.pipeline_mode<synchronous>, transform_indices = @transform_3, window_bounds = array<i64: 128, 384>}, {pipeline_mode = #tpu.pipeline_mode<synchronous>, transform_indices = @transform_4, window_bounds = array<i64: 1, 384>}, {pipeline_mode = #tpu.pipeline_mode<synchronous>, transform_indices = @transform_5, window_bounds = array<i64: 1, 128>}, {pipeline_mode = #tpu.pipeline_mode<synchronous>, transform_indices = @transform_6, window_bounds = array<i64: 8, 128>}]} {
    %c0 = arith.constant 0 : index
    %c0_0 = arith.constant 0 : index
    %0 = vector.load %arg2[%c0, %c0_0] : memref<8x128xf32, #tpu.memory_space<vmem>>, vector<8x128xf32>
    %c0_1 = arith.constant 0 : index
    %c0_2 = arith.constant 0 : index
    %1 = vector.load %arg1[%c0_1, %c0_2] : memref<8x160xbf16, #tpu.memory_space<vmem>>, vector<8x160xbf16>
    %c0_3 = arith.constant 0 : index
    %c0_4 = arith.constant 0 : index
    %2 = vector.load %arg3[%c0_3, %c0_4] : memref<160x384xbf16, #tpu.memory_space<vmem>>, vector<160x384xbf16>
    %cst = arith.constant dense<0.000000e+00> : vector<8x384xf32>
    %3 = tpu.matmul %1, %2, %cst {dimension_numbers = #tpu.dot_dimension_numbers<[1], [0], [0], [1], [0, 0, 1, 1], [], []>} : vector<8x160xbf16>, vector<160x384xbf16>, vector<8x384xf32> -> vector<8x384xf32>
    %c0_5 = arith.constant 0 : index
    %c0_6 = arith.constant 0 : index
    %4 = vector.load %arg5[%c0_5, %c0_6] : memref<1x384xf32, #tpu.memory_space<vmem>>, vector<1x384xf32>
    %5 = vector.broadcast %4 : vector<1x384xf32> to vector<8x384xf32>
    %6 = arith.addf %3, %5 : vector<8x384xf32>
    %7 = arith.truncf %0 : vector<8x128xf32> to vector<8x128xbf16>
    %c0_7 = arith.constant 0 : index
    %c0_8 = arith.constant 0 : index
    %8 = vector.load %arg4[%c0_7, %c0_8] : memref<128x384xbf16, #tpu.memory_space<vmem>>, vector<128x384xbf16>
    %cst_9 = arith.constant dense<0.000000e+00> : vector<8x384xf32>
    %9 = tpu.matmul %7, %8, %cst_9 {dimension_numbers = #tpu.dot_dimension_numbers<[1], [0], [0], [1], [0, 0, 1, 1], [], []>} : vector<8x128xbf16>, vector<128x384xbf16>, vector<8x384xf32> -> vector<8x384xf32>
    %10 = vector.extract_strided_slice %6 {offsets = [0, 0], sizes = [8, 128], strides = [1, 1]} : vector<8x384xf32> to vector<8x128xf32>
    %11 = vector.extract_strided_slice %9 {offsets = [0, 0], sizes = [8, 128], strides = [1, 1]} : vector<8x384xf32> to vector<8x128xf32>
    %12 = arith.addf %10, %11 : vector<8x128xf32>
    %13 = arith.negf %12 : vector<8x128xf32>
    %14 = math.exp %13 : vector<8x128xf32>
    %cst_10 = arith.constant 1.000000e+00 : f32
    %15 = vector.broadcast %cst_10 : f32 to vector<8x128xf32>
    %16 = arith.addf %15, %14 : vector<8x128xf32>
    %17 = arith.divf %15, %16 : vector<8x128xf32>
    %18 = vector.extract_strided_slice %6 {offsets = [0, 128], sizes = [8, 128], strides = [1, 1]} : vector<8x384xf32> to vector<8x128xf32>
    %19 = vector.extract_strided_slice %9 {offsets = [0, 128], sizes = [8, 128], strides = [1, 1]} : vector<8x384xf32> to vector<8x128xf32>
    %20 = arith.addf %18, %19 : vector<8x128xf32>
    %21 = arith.negf %20 : vector<8x128xf32>
    %22 = math.exp %21 : vector<8x128xf32>
    %cst_11 = arith.constant 1.000000e+00 : f32
    %23 = vector.broadcast %cst_11 : f32 to vector<8x128xf32>
    %24 = arith.addf %23, %22 : vector<8x128xf32>
    %25 = arith.divf %23, %24 : vector<8x128xf32>
    %26 = vector.extract_strided_slice %6 {offsets = [0, 256], sizes = [8, 128], strides = [1, 1]} : vector<8x384xf32> to vector<8x128xf32>
    %27 = vector.extract_strided_slice %9 {offsets = [0, 256], sizes = [8, 128], strides = [1, 1]} : vector<8x384xf32> to vector<8x128xf32>
    %c0_12 = arith.constant 0 : index
    %c0_13 = arith.constant 0 : index
    %28 = vector.load %arg6[%c0_12, %c0_13] : memref<1x128xf32, #tpu.memory_space<vmem>>, vector<1x128xf32>
    %29 = vector.broadcast %28 : vector<1x128xf32> to vector<8x128xf32>
    %30 = arith.addf %27, %29 : vector<8x128xf32>
    %31 = arith.mulf %17, %30 : vector<8x128xf32>
    %32 = arith.addf %26, %31 : vector<8x128xf32>
    %33 = math.tanh %32 : vector<8x128xf32>
    %cst_14 = arith.constant 1.000000e+00 : f32
    %34 = vector.broadcast %cst_14 : f32 to vector<8x128xf32>
    %35 = arith.subf %34, %25 : vector<8x128xf32>
    %36 = arith.mulf %35, %33 : vector<8x128xf32>
    %37 = arith.mulf %25, %0 : vector<8x128xf32>
    %38 = arith.addf %36, %37 : vector<8x128xf32>
    %c0_15 = arith.constant 0 : index
    %c0_16 = arith.constant 0 : index
    %39 = vector.load %arg7[%c0_15, %c0_16] : memref<8x128xf32, #tpu.memory_space<vmem>>, vector<8x128xf32>
    tpu.vector_store %arg7[%c0_15, %c0_16], %38 {strides = array<i32>} : memref<8x128xf32, #tpu.memory_space<vmem>>, vector<8x128xf32>,
    return
  }
  func.func @transform_0(%arg0: i32) -> (i32, i32) {
    %c0_i32 = arith.constant 0 : i32
    %c0_i32_0 = arith.constant 0 : i32
    %c0_i32_1 = arith.constant 0 : i32
    return %c0_i32, %c0_i32_0 : i32, i32
  }
  func.func @transform_1(%arg0: i32) -> (i32, i32) {
    %c0_i32 = arith.constant 0 : i32
    %c0_i32_0 = arith.constant 0 : i32
    %c0_i32_1 = arith.constant 0 : i32
    return %c0_i32, %c0_i32_0 : i32, i32
  }
  func.func @transform_2(%arg0: i32) -> (i32, i32) {
    %c0_i32 = arith.constant 0 : i32
    %c0_i32_0 = arith.constant 0 : i32
    %c0_i32_1 = arith.constant 0 : i32
    return %c0_i32, %c0_i32_0 : i32, i32
  }
  func.func @transform_3(%arg0: i32) -> (i32, i32) {
    %c0_i32 = arith.constant 0 : i32
    %c0_i32_0 = arith.constant 0 : i32
    %c0_i32_1 = arith.constant 0 : i32
    return %c0_i32, %c0_i32_0 : i32, i32
  }
  func.func @transform_4(%arg0: i32) -> (i32, i32) {
    %c0_i32 = arith.constant 0 : i32
    %c0_i32_0 = arith.constant 0 : i32
    %c0_i32_1 = arith.constant 0 : i32
    return %c0_i32, %c0_i32_0 : i32, i32
  }
  func.func @transform_5(%arg0: i32) -> (i32, i32) {
    %c0_i32 = arith.constant 0 : i32
    %c0_i32_0 = arith.constant 0 : i32
    %c0_i32_1 = arith.constant 0 : i32
    return %c0_i32, %c0_i32_0 : i32, i32
  }
  func.func @transform_6(%arg0: i32) -> (i32, i32) {
    %c0_i32 = arith.constant 0 : i32
    %c0_i32_0 = arith.constant 0 : i32
    %c0_i32_1 = arith.constant 0 : i32
    return %c0_i32, %c0_i32_0 : i32, i32
  }
}

</mosaic_0001>

<llo_original>
// kernel: tpu_custom_call.1
$region0: #{tpu_custom_call.1}
  #allocation0 [shape = 'u32[]', space=smem, size = 0x4, offset = 0x4, fixed_abs, tag = 'smem constant byte address 0x4 - core index']
  #allocation1 [shape = 'u32[144,128]{1,0:T(1,128)}', space=vmem, size = 0x12000, scoped, tag = 'internal scratch']
  %s0 = inlined_call_operand.hbm [shape: bf16[8,160], index: 0, kind: input, shape index: {}]
  %s1 = inlined_call_operand.hbm [shape: f32[8,128], index: 1, kind: input, shape index: {}]
  %s2 = inlined_call_operand.hbm [shape: bf16[160,384], index: 2, kind: input, shape index: {}]
  %s3 = inlined_call_operand.hbm [shape: bf16[128,384], index: 3, kind: input, shape index: {}]
  %s4 = inlined_call_operand.vmem [shape: f32[1,384], index: 4, kind: input, shape index: {}]
  %s5 = inlined_call_operand.vmem [shape: f32[1,128], index: 5, kind: input, shape index: {}]
  %s6 = inlined_call_operand.hbm [shape: f32[8,128], index: 6, kind: output, shape index: {}]
  %s7 = sld [smem:[#allocation0]]
  $region50: #{tpu_custom_call.1} parent=0
    _
  %s9 = ssub.s32 1, %s7
  %s10 = scalar_select 0, %s9, %s7
  $region1: #{tpu_custom_call.1} parent=0
    #allocation2 [shape = 'u8[4096]{0}', space=vmem, size = 0x1000, scoped, tag = 'input window, operand 0, single buffered']
    #allocation3 [shape = 's32[1]{0}', space=sflag, size = 0x4, scoped, tag = 'scoped memory for tpu_custom_call.1']
    #allocation4 [shape = 's32[1]{0}', space=sflag, size = 0x4, scoped, tag = 'scoped memory for tpu_custom_call.1']
    #allocation5 [shape = 'u8[4096]{0}', space=vmem, size = 0x1000, scoped, tag = 'input window, operand 1, single buffered']
    #allocation6 [shape = 's32[1]{0}', space=sflag, size = 0x4, scoped, tag = 'scoped memory for tpu_custom_call.1']
    #allocation7 [shape = 'u8[122880]{0}', space=vmem, size = 0x1e000, scoped, tag = 'input window, operand 2, single buffered']
    #allocation8 [shape = 'u8[98304]{0}', space=vmem, size = 0x18000, scoped, tag = 'input window, operand 3, single buffered']
    #allocation9 [shape = 's32[1]{0}', space=sflag, size = 0x4, scoped, tag = 'scoped memory for tpu_custom_call.1']
    #allocation10 [shape = 'u8[4096]{0}', space=vmem, size = 0x1000, scoped, tag = 'output window, operand 0, single buffered']
    %11 = vsyncpa [#allocation3], 0
    %12 = vsyncpa [#allocation6], 0
    %13 = vsyncpa [#allocation9], 0
    %14 = vsyncpa [#allocation4], 0
    // Predicated region
    $region2: #{tpu_custom_call.1} parent=1 // pred_check
      _
    $region3: #{tpu_custom_call.1} parent=1 // pred_check_branch
      %16 = sbr.rel (0) target = $region5
    $region4: #{tpu_custom_call.1} parent=1 // pred_region
      %s18 = ssub.s32 128, 128
      %19 = vsyncadd [#allocation3], %s18
      %s21 = sshll.u32 [#allocation2], 4
      %s22 = int_to_ptr.vmem [resolvable:$true] %s21
      %24 = dma.hbm_to_vmem [thread:$0]  %s0, 128, %s22, [#allocation3]
    $region5: #{tpu_custom_call.1} parent=1 // pred_fallthru
      _
    // Predicated region
    $region6: #{tpu_custom_call.1} parent=1 // pred_check
      _
    $region7: #{tpu_custom_call.1} parent=1 // pred_check_branch
      %26 = sbr.rel (0) target = $region9
    $region8: #{tpu_custom_call.1} parent=1 // pred_region
      %s28 = ssub.s32 128, 128
      %29 = vsyncadd [#allocation6], %s28
      %s31 = sshll.u32 [#allocation5], 4
      %s32 = int_to_ptr.vmem [resolvable:$true] %s31
      %34 = dma.hbm_to_vmem [thread:$0]  %s1, 128, %s32, [#allocation6]
    $region9: #{tpu_custom_call.1} parent=1 // pred_fallthru
      _
    // Predicated region
    $region10: #{tpu_custom_call.1} parent=1 // pred_check
      _
    $region11: #{tpu_custom_call.1} parent=1 // pred_check_branch
      %36 = sbr.rel (0) target = $region13
    $region12: #{tpu_custom_call.1} parent=1 // pred_region
      %s38 = ssub.s32 3840, 3840
      %39 = vsyncadd [#allocation6], %s38
      %s40 = sshll.u32 [#allocation7], 4
      %s41 = int_to_ptr.vmem [resolvable:$true] %s40
      %46 = dma.hbm_to_vmem [thread:$0]  %s2, 3840, %s41, [#allocation6], 192, 192, 12
    $region13: #{tpu_custom_call.1} parent=1 // pred_fallthru
      _
    // Predicated region
    $region14: #{tpu_custom_call.1} parent=1 // pred_check
      _
    $region15: #{tpu_custom_call.1} parent=1 // pred_check_branch
      %48 = sbr.rel (0) target = $region17
    $region16: #{tpu_custom_call.1} parent=1 // pred_region
      %s50 = ssub.s32 3072, 3072
      %51 = vsyncadd [#allocation9], %s50
      %s52 = sshll.u32 [#allocation8], 4
      %s53 = int_to_ptr.vmem [resolvable:$true] %s52
      %58 = dma.hbm_to_vmem [thread:$0]  %s3, 3072, %s53, [#allocation9], 192, 192, 12
    $region17: #{tpu_custom_call.1} parent=1 // pred_fallthru
      _
    // Predicated region
    $region18: #{tpu_custom_call.1} parent=1 // pred_check
      _
    $region19: #{tpu_custom_call.1} parent=1 // pred_check_branch
      %60 = sbr.rel (0) target = $region21
    $region20: #{tpu_custom_call.1} parent=1 // pred_region
      _
    $region21: #{tpu_custom_call.1} parent=1 // pred_fallthru
      _
    // Predicated region
    $region22: #{tpu_custom_call.1} parent=1 // pred_check
      _
    $region23: #{tpu_custom_call.1} parent=1 // pred_check_branch
      %62 = sbr.rel (0) target = $region25
    $region24: #{tpu_custom_call.1} parent=1 // pred_region
      _
    $region25: #{tpu_custom_call.1} parent=1 // pred_fallthru
      _
    // Predicated region
    $region26: #{tpu_custom_call.1} parent=1 // pred_check
      _
    $region27: #{tpu_custom_call.1} parent=1 // pred_check_branch
      %64 = sbr.rel (0) target = $region29
    $region28: #{tpu_custom_call.1} parent=1 // pred_region
      %65 = dma.done [#allocation3], 128
    $region29: #{tpu_custom_call.1} parent=1 // pred_fallthru
      _
    // Predicated region
    $region30: #{tpu_custom_call.1} parent=1 // pred_check
      _
    $region31: #{tpu_custom_call.1} parent=1 // pred_check_branch
      %67 = sbr.rel (0) target = $region33
    $region32: #{tpu_custom_call.1} parent=1 // pred_region
      %68 = dma.done [#allocation6], 128
    $region33: #{tpu_custom_call.1} parent=1 // pred_fallthru
      _
    // Predicated region
    $region34: #{tpu_custom_call.1} parent=1 // pred_check
      _
    $region35: #{tpu_custom_call.1} parent=1 // pred_check_branch
      %70 = sbr.rel (0) target = $region37
    $region36: #{tpu_custom_call.1} parent=1 // pred_region
      %71 = dma.done [#allocation6], 3840
    $region37: #{tpu_custom_call.1} parent=1 // pred_fallthru
      _
    // Predicated region
    $region38: #{tpu_custom_call.1} parent=1 // pred_check
      _
    $region39: #{tpu_custom_call.1} parent=1 // pred_check_branch
      %73 = sbr.rel (0) target = $region41
    $region40: #{tpu_custom_call.1} parent=1 // pred_region
      %74 = dma.done [#allocation9], 3072
    $region41: #{tpu_custom_call.1} parent=1 // pred_fallthru
      _
    %v76 = vld [vmem:[#allocation5] sm:$0xff]
    %v77 = vld [vmem:[#allocation2] sm:$0xff]
    %v78 = vld [vmem:[#allocation7] sm:$0xff]
    %v79 = vld [vmem:[#allocation7 + $0x8] sm:$0xf]
    %v80 = vld [vmem:[#allocation7 + $0xc] sm:$0xff]
    %v81 = vld [vmem:[#allocation7 + $0x14] sm:$0xf]
    %v82 = vld [vmem:[#allocation7 + $0x18] sm:$0xff]
    %v83 = vld [vmem:[#allocation7 + $0x20] sm:$0xf]
    %v84 = vld [vmem:[#allocation7 + $0x24] sm:$0xff]
    %v85 = vld [vmem:[#allocation7 + $0x2c] sm:$0xf]
    %v86 = vld [vmem:[#allocation7 + $0x30] sm:$0xff]
    %v87 = vld [vmem:[#allocation7 + $0x38] sm:$0xf]
    %v88 = vld [vmem:[#allocation7 + $0x3c] sm:$0xff]
    %v89 = vld [vmem:[#allocation7 + $0x44] sm:$0xf]
    %v90 = vld [vmem:[#allocation7 + $0x48] sm:$0xff]
    %v91 = vld [vmem:[#allocation7 + $0x50] sm:$0xf]
    %v92 = vld [vmem:[#allocation7 + $0x54] sm:$0xff]
    %v93 = vld [vmem:[#allocation7 + $0x5c] sm:$0xf]
    %v94 = vld [vmem:[#allocation7 + $0x60] sm:$0xff]
    %v95 = vld [vmem:[#allocation7 + $0x68] sm:$0xf]
    %v96 = vld [vmem:[#allocation7 + $0x6c] sm:$0xff]
    %v97 = vld [vmem:[#allocation7 + $0x74] sm:$0xf]
    %v98 = vld [vmem:[#allocation7 + $0x78] sm:$0xff]
    %v99 = vld [vmem:[#allocation7 + $0x80] sm:$0xf]
    %v100 = vld [vmem:[#allocation7 + $0x84] sm:$0xff]
    %v101 = vld [vmem:[#allocation7 + $0x8c] sm:$0xf]
    %v102 = vld [vmem:[#allocation7 + $0x90] sm:$0xff]
    %v103 = vld [vmem:[#allocation7 + $0x98] sm:$0xf]
    %v104 = vld [vmem:[#allocation7 + $0x9c] sm:$0xff]
    %v105 = vld [vmem:[#allocation7 + $0xa4] sm:$0xf]
    %v106 = vld [vmem:[#allocation7 + $0xa8] sm:$0xff]
    %v107 = vld [vmem:[#allocation7 + $0xb0] sm:$0xf]
    %v108 = vld [vmem:[#allocation7 + $0xb4] sm:$0xff]
    %v109 = vld [vmem:[#allocation7 + $0xbc] sm:$0xf]
    %v110 = vld [vmem:[#allocation7 + $0xc0] sm:$0xff]
    %v111 = vld [vmem:[#allocation7 + $0xc8] sm:$0xf]
    %v112 = vld [vmem:[#allocation7 + $0xcc] sm:$0xff]
    %v113 = vld [vmem:[#allocation7 + $0xd4] sm:$0xf]
    %v114 = vld [vmem:[#allocation7 + $0xd8] sm:$0xff]
    %v115 = vld [vmem:[#allocation7 + $0xe0] sm:$0xf]
    %v116 = vld [vmem:[#allocation7 + $0xe4] sm:$0xff]
    %v117 = vld [vmem:[#allocation7 + $0xec] sm:$0xf]
    %v118 = vld [vmem:[%s4] sm:$0x7]
    %v120 = vlaneseq
    %v121 = vshrl.u32 %v120, 7
    %v122 = vsub.s32 0, %v121
    %v123 = vrot.slane %v118, %v122
    %v124 = vlaneseq
    %v125 = vshrl.u32 %v124, 7
    %v126 = vsub.s32 1, %v125
    %v127 = vrot.slane %v118, %v126
    %v128 = vlaneseq
    %v129 = vshrl.u32 %v128, 7
    %v130 = vsub.s32 2, %v129
    %v131 = vrot.slane %v118, %v130
    %v136 = vunpack.c.l.b16 %v77
    %v137 = vunpack.c.h.b16 %v77
    %v138 = vpack.c.b16 %v136, %v136
    %v139 = vpack.c.b16 %v137, %v137
    %v181 = vunpack.c.l.b16 %v78
    %v182 = vunpack.c.h.b16 %v78
    %v183 = vunpack.c.l.b16 %v79
    %v184 = vunpack.c.l.b16 %v80
    %v185 = vunpack.c.h.b16 %v80
    %v186 = vunpack.c.l.b16 %v81
    %v187 = vunpack.c.l.b16 %v82
    %v188 = vunpack.c.h.b16 %v82
    %v189 = vunpack.c.l.b16 %v83
    %v190 = vunpack.c.l.b16 %v84
    %v191 = vunpack.c.h.b16 %v84
    %v192 = vunpack.c.l.b16 %v85
    %v193 = vunpack.c.l.b16 %v86
    %v194 = vunpack.c.h.b16 %v86
    %v195 = vunpack.c.l.b16 %v87
    %v196 = vunpack.c.l.b16 %v88
    %v197 = vunpack.c.h.b16 %v88
    %v198 = vunpack.c.l.b16 %v89
    %v199 = vunpack.c.l.b16 %v90
    %v200 = vunpack.c.h.b16 %v90
    %v201 = vunpack.c.l.b16 %v91
    %v202 = vunpack.c.l.b16 %v92
    %v203 = vunpack.c.h.b16 %v92
    %v204 = vunpack.c.l.b16 %v93
    %v205 = vunpack.c.l.b16 %v94
    %v206 = vunpack.c.h.b16 %v94
    %v207 = vunpack.c.l.b16 %v95
    %v208 = vunpack.c.l.b16 %v96
    %v209 = vunpack.c.h.b16 %v96
    %v210 = vunpack.c.l.b16 %v97
    %v211 = vunpack.c.l.b16 %v98
    %v212 = vunpack.c.h.b16 %v98
    %v213 = vunpack.c.l.b16 %v99
    %v214 = vunpack.c.l.b16 %v100
    %v215 = vunpack.c.h.b16 %v100
    %v216 = vunpack.c.l.b16 %v101
    %v217 = vunpack.c.l.b16 %v102
    %v218 = vunpack.c.h.b16 %v102
    %v219 = vunpack.c.l.b16 %v103
    %v220 = vunpack.c.l.b16 %v104
    %v221 = vunpack.c.h.b16 %v104
    %v222 = vunpack.c.l.b16 %v105
    %v223 = vunpack.c.l.b16 %v106
    %v224 = vunpack.c.h.b16 %v106
    %v225 = vunpack.c.l.b16 %v107
    %v226 = vunpack.c.l.b16 %v108
    %v227 = vunpack.c.h.b16 %v108
    %v228 = vunpack.c.l.b16 %v109
    %v229 = vunpack.c.l.b16 %v110
    %v230 = vunpack.c.h.b16 %v110
    %v231 = vunpack.c.l.b16 %v111
    %v232 = vunpack.c.l.b16 %v112
    %v233 = vunpack.c.h.b16 %v112
    %v234 = vunpack.c.l.b16 %v113
    %v235 = vunpack.c.l.b16 %v114
    %v236 = vunpack.c.h.b16 %v114
    %v237 = vunpack.c.l.b16 %v115
    %v238 = vunpack.c.l.b16 %v116
    %v239 = vunpack.c.h.b16 %v116
    %v240 = vunpack.c.l.b16 %v117
    %v241 = vpack.c.b16 %v184, %v181
    %v242 = vpack.c.b16 %v185, %v182
    %v243 = vpack.c.b16 %v186, %v183
    %v244 = vpack.c.b16 %v190, %v187
    %v245 = vpack.c.b16 %v191, %v188
    %v246 = vpack.c.b16 %v192, %v189
    %v247 = vpack.c.b16 %v196, %v193
    %v248 = vpack.c.b16 %v197, %v194
    %v249 = vpack.c.b16 %v198, %v195
    %v250 = vpack.c.b16 %v202, %v199
    %v251 = vpack.c.b16 %v203, %v200
    %v252 = vpack.c.b16 %v204, %v201
    %v253 = vpack.c.b16 %v208, %v205
    %v254 = vpack.c.b16 %v209, %v206
    %v255 = vpack.c.b16 %v210, %v207
    %v256 = vpack.c.b16 %v214, %v211
    %v257 = vpack.c.b16 %v215, %v212
    %v258 = vpack.c.b16 %v216, %v213
    %v259 = vpack.c.b16 %v220, %v217
    %v260 = vpack.c.b16 %v221, %v218
    %v261 = vpack.c.b16 %v222, %v219
    %v262 = vpack.c.b16 %v226, %v223
    %v263 = vpack.c.b16 %v227, %v224
    %v264 = vpack.c.b16 %v228, %v225
    %v265 = vpack.c.b16 %v232, %v229
    %v266 = vpack.c.b16 %v233, %v230
    %v267 = vpack.c.b16 %v234, %v231
    %v268 = vpack.c.b16 %v238, %v235
    %v269 = vpack.c.b16 %v239, %v236
    %v270 = vpack.c.b16 %v240, %v237
    %vm301 = vcmask 261120
    %v303 = vsel %vm301, %v139, 0
    %305 = vmatprep.subr.bf16.mxu0 %v263
    %306 = vmatpush1.bf16.msra.mxu0 %v262
    %307 = vmatprep.subr.bf16.mxu0 %v260
    %308 = vmatpush1.bf16.msra.mxu0 %v259
    %309 = vmatprep.subr.bf16.mxu0 %v257
    %310 = vmatpush1.bf16.msra.mxu0 %v256
    %311 = vmatprep.subr.bf16.mxu0 %v254
    %312 = vmatpush1.bf16.msra.mxu0 %v253
    %313 = vmatprep.subr.bf16.mxu0 %v251
    %314 = vmatpush1.bf16.msra.mxu0 %v250
    %315 = vmatprep.subr.bf16.mxu0 %v248
    %316 = vmatpush1.bf16.msra.mxu0 %v247
    %317 = vmatprep.subr.bf16.mxu0 %v245
    %318 = vmatpush1.bf16.msra.mxu0 %v244
    %319 = vmatprep.subr.bf16.mxu0 %v242
    %320 = vmatpush1.bf16.msra.mxu0 %v241
    %321 = vmatprep.subr.bf16.mxu0 0
    %322 = vmatpush2.bf16.msra.mxu0 0
    %323 = vmatprep.subr.bf16.mxu0 0
    %324 = vmatpush2.bf16.msra.mxu0 0
    %325 = vmatprep.subr.bf16.mxu0 0
    %326 = vmatpush2.bf16.msra.mxu0 0
    %327 = vmatprep.subr.bf16.mxu0 0
    %328 = vmatpush2.bf16.msra.mxu0 0
    %329 = vmatprep.subr.bf16.mxu0 0
    %330 = vmatpush2.bf16.msra.mxu0 0
    %331 = vmatprep.subr.bf16.mxu0 0
    %332 = vmatpush2.bf16.msra.mxu0 0
    %333 = vmatprep.subr.bf16.mxu0 %v269
    %334 = vmatpush2.bf16.msra.mxu0 %v268
    %335 = vmatprep.subr.bf16.mxu0 %v266
    %336 = vmatpush2.bf16.msra.mxu0 %v265
    %337 = vmatprep.mubr.bf16.mxu0 %v303
    %338 = vmatmul.mubr.bf16.gmra.mxu0 %v138
    %v339 = vpop.f32.mrf.mxu0
    %v340 = vadd.f32 %v123, %v339
    %v341 = vpop.f32.mrf.mxu0
    %v342 = vadd.f32 %v127, %v341
    %v343 = vpop.f32.mrf.mxu0
    %v344 = vpop.f32.mrf.mxu0
    %345 = vdwg.mxu0
    %346 = vmatprep.subr.bf16.mxu0 0
    %347 = vmatpush1.bf16.msra.mxu0 %v264
    %348 = vmatprep.subr.bf16.mxu0 0
    %349 = vmatpush1.bf16.msra.mxu0 %v261
    %350 = vmatprep.subr.bf16.mxu0 0
    %351 = vmatpush1.bf16.msra.mxu0 %v258
    %352 = vmatprep.subr.bf16.mxu0 0
    %353 = vmatpush1.bf16.msra.mxu0 %v255
    %354 = vmatprep.subr.bf16.mxu0 0
    %355 = vmatpush1.bf16.msra.mxu0 %v252
    %356 = vmatprep.subr.bf16.mxu0 0
    %357 = vmatpush1.bf16.msra.mxu0 %v249
    %358 = vmatprep.subr.bf16.mxu0 0
    %359 = vmatpush1.bf16.msra.mxu0 %v246
    %360 = vmatprep.subr.bf16.mxu0 0
    %361 = vmatpush1.bf16.msra.mxu0 %v243
    %362 = vmatprep.subr.bf16.mxu0 0
    %363 = vmatpush2.bf16.msra.mxu0 0
    %364 = vmatprep.subr.bf16.mxu0 0
    %365 = vmatpush2.bf16.msra.mxu0 0
    %366 = vmatprep.subr.bf16.mxu0 0
    %367 = vmatpush2.bf16.msra.mxu0 0
    %368 = vmatprep.subr.bf16.mxu0 0
    %369 = vmatpush2.bf16.msra.mxu0 0
    %370 = vmatprep.subr.bf16.mxu0 0
    %371 = vmatpush2.bf16.msra.mxu0 0
    %372 = vmatprep.subr.bf16.mxu0 0
    %373 = vmatpush2.bf16.msra.mxu0 0
    %374 = vmatprep.subr.bf16.mxu0 0
    %375 = vmatpush2.bf16.msra.mxu0 %v270
    %376 = vmatprep.subr.bf16.mxu0 0
    %377 = vmatpush2.bf16.msra.mxu0 %v267
    %378 = vmatprep.mubr.bf16.mxu0 %v303
    %379 = vmatmul.mubr.bf16.gmra.mxu0 %v138
    %v380 = vpop.f32.mrf.mxu0
    %v381 = vadd.f32 %v131, %v380
    %v382 = vpop.f32.mrf.mxu0
    %v383 = vpop.f32.mrf.mxu0
    %v384 = vpop.f32.mrf.mxu0
    %385 = vdwg.mxu0
    %v386 = vpack.c.bf16 %v76, %v76
    %v387 = vld [vmem:[#allocation8] sm:$0xff]
    %v388 = vld [vmem:[#allocation8 + $0x8] sm:$0xf]
    %v389 = vld [vmem:[#allocation8 + $0xc] sm:$0xff]
    %v390 = vld [vmem:[#allocation8 + $0x14] sm:$0xf]
    %v391 = vld [vmem:[#allocation8 + $0x18] sm:$0xff]
    %v392 = vld [vmem:[#allocation8 + $0x20] sm:$0xf]
    %v393 = vld [vmem:[#allocation8 + $0x24] sm:$0xff]
    %v394 = vld [vmem:[#allocation8 + $0x2c] sm:$0xf]
    %v395 = vld [vmem:[#allocation8 + $0x30] sm:$0xff]
    %v396 = vld [vmem:[#allocation8 + $0x38] sm:$0xf]
    %v397 = vld [vmem:[#allocation8 + $0x3c] sm:$0xff]
    %v398 = vld [vmem:[#allocation8 + $0x44] sm:$0xf]
    %v399 = vld [vmem:[#allocation8 + $0x48] sm:$0xff]
    %v400 = vld [vmem:[#allocation8 + $0x50] sm:$0xf]
    %v401 = vld [vmem:[#allocation8 + $0x54] sm:$0xff]
    %v402 = vld [vmem:[#allocation8 + $0x5c] sm:$0xf]
    %v403 = vld [vmem:[#allocation8 + $0x60] sm:$0xff]
    %v404 = vld [vmem:[#allocation8 + $0x68] sm:$0xf]
    %v405 = vld [vmem:[#allocation8 + $0x6c] sm:$0xff]
    %v406 = vld [vmem:[#allocation8 + $0x74] sm:$0xf]
    %v407 = vld [vmem:[#allocation8 + $0x78] sm:$0xff]
    %v408 = vld [vmem:[#allocation8 + $0x80] sm:$0xf]
    %v409 = vld [vmem:[#allocation8 + $0x84] sm:$0xff]
    %v410 = vld [vmem:[#allocation8 + $0x8c] sm:$0xf]
    %v411 = vld [vmem:[#allocation8 + $0x90] sm:$0xff]
    %v412 = vld [vmem:[#allocation8 + $0x98] sm:$0xf]
    %v413 = vld [vmem:[#allocation8 + $0x9c] sm:$0xff]
    %v414 = vld [vmem:[#allocation8 + $0xa4] sm:$0xf]
    %v415 = vld [vmem:[#allocation8 + $0xa8] sm:$0xff]
    %v416 = vld [vmem:[#allocation8 + $0xb0] sm:$0xf]
    %v417 = vld [vmem:[#allocation8 + $0xb4] sm:$0xff]
    %v418 = vld [vmem:[#allocation8 + $0xbc] sm:$0xf]
    %v451 = vunpack.c.l.b16 %v387
    %v452 = vunpack.c.h.b16 %v387
    %v453 = vunpack.c.l.b16 %v388
    %v454 = vunpack.c.l.b16 %v389
    %v455 = vunpack.c.h.b16 %v389
    %v456 = vunpack.c.l.b16 %v390
    %v457 = vunpack.c.l.b16 %v391
    %v458 = vunpack.c.h.b16 %v391
    %v459 = vunpack.c.l.b16 %v392
    %v460 = vunpack.c.l.b16 %v393
    %v461 = vunpack.c.h.b16 %v393
    %v462 = vunpack.c.l.b16 %v394
    %v463 = vunpack.c.l.b16 %v395
    %v464 = vunpack.c.h.b16 %v395
    %v465 = vunpack.c.l.b16 %v396
    %v466 = vunpack.c.l.b16 %v397
    %v467 = vunpack.c.h.b16 %v397
    %v468 = vunpack.c.l.b16 %v398
    %v469 = vunpack.c.l.b16 %v399
    %v470 = vunpack.c.h.b16 %v399
    %v471 = vunpack.c.l.b16 %v400
    %v472 = vunpack.c.l.b16 %v401
    %v473 = vunpack.c.h.b16 %v401
    %v474 = vunpack.c.l.b16 %v402
    %v475 = vunpack.c.l.b16 %v403
    %v476 = vunpack.c.h.b16 %v403
    %v477 = vunpack.c.l.b16 %v404
    %v478 = vunpack.c.l.b16 %v405
    %v479 = vunpack.c.h.b16 %v405
    %v480 = vunpack.c.l.b16 %v406
    %v481 = vunpack.c.l.b16 %v407
    %v482 = vunpack.c.h.b16 %v407
    %v483 = vunpack.c.l.b16 %v408
    %v484 = vunpack.c.l.b16 %v409
    %v485 = vunpack.c.h.b16 %v409
    %v486 = vunpack.c.l.b16 %v410
    %v487 = vunpack.c.l.b16 %v411
    %v488 = vunpack.c.h.b16 %v411
    %v489 = vunpack.c.l.b16 %v412
    %v490 = vunpack.c.l.b16 %v413
    %v491 = vunpack.c.h.b16 %v413
    %v492 = vunpack.c.l.b16 %v414
    %v493 = vunpack.c.l.b16 %v415
    %v494 = vunpack.c.h.b16 %v415
    %v495 = vunpack.c.l.b16 %v416
    %v496 = vunpack.c.l.b16 %v417
    %v497 = vunpack.c.h.b16 %v417
    %v498 = vunpack.c.l.b16 %v418
    %v499 = vpack.c.b16 %v454, %v451
    %v500 = vpack.c.b16 %v455, %v452
    %v501 = vpack.c.b16 %v456, %v453
    %v502 = vpack.c.b16 %v460, %v457
    %v503 = vpack.c.b16 %v461, %v458
    %v504 = vpack.c.b16 %v462, %v459
    %v505 = vpack.c.b16 %v466, %v463
    %v506 = vpack.c.b16 %v467, %v464
    %v507 = vpack.c.b16 %v468, %v465
    %v508 = vpack.c.b16 %v472, %v469
    %v509 = vpack.c.b16 %v473, %v470
    %v510 = vpack.c.b16 %v474, %v471
    %v511 = vpack.c.b16 %v478, %v475
    %v512 = vpack.c.b16 %v479, %v476
    %v513 = vpack.c.b16 %v480, %v477
    %v514 = vpack.c.b16 %v484, %v481
    %v515 = vpack.c.b16 %v485, %v482
    %v516 = vpack.c.b16 %v486, %v483
    %v517 = vpack.c.b16 %v490, %v487
    %v518 = vpack.c.b16 %v491, %v488
    %v519 = vpack.c.b16 %v492, %v489
    %v520 = vpack.c.b16 %v496, %v493
    %v521 = vpack.c.b16 %v497, %v494
    %v522 = vpack.c.b16 %v498, %v495
    %547 = vmatprep.subr.bf16.mxu0 %v521
    %548 = vmatpush1.bf16.msra.mxu0 %v520
    %549 = vmatprep.subr.bf16.mxu0 %v518
    %550 = vmatpush1.bf16.msra.mxu0 %v517
    %551 = vmatprep.subr.bf16.mxu0 %v515
    %552 = vmatpush1.bf16.msra.mxu0 %v514
    %553 = vmatprep.subr.bf16.mxu0 %v512
    %554 = vmatpush1.bf16.msra.mxu0 %v511
    %555 = vmatprep.subr.bf16.mxu0 %v509
    %556 = vmatpush1.bf16.msra.mxu0 %v508
    %557 = vmatprep.subr.bf16.mxu0 %v506
    %558 = vmatpush1.bf16.msra.mxu0 %v505
    %559 = vmatprep.subr.bf16.mxu0 %v503
    %560 = vmatpush1.bf16.msra.mxu0 %v502
    %561 = vmatprep.subr.bf16.mxu0 %v500
    %562 = vmatpush1.bf16.msra.mxu0 %v499
    %563 = vmatprep.subr.bf16.mxu0 0
    %564 = vmatpush2.bf16.msra.mxu0 0
    %565 = vmatprep.subr.bf16.mxu0 0
    %566 = vmatpush2.bf16.msra.mxu0 0
    %567 = vmatprep.subr.bf16.mxu0 0
    %568 = vmatpush2.bf16.msra.mxu0 0
    %569 = vmatprep.subr.bf16.mxu0 0
    %570 = vmatpush2.bf16.msra.mxu0 0
    %571 = vmatprep.subr.bf16.mxu0 0
    %572 = vmatpush2.bf16.msra.mxu0 0
    %573 = vmatprep.subr.bf16.mxu0 0
    %574 = vmatpush2.bf16.msra.mxu0 0
    %575 = vmatprep.subr.bf16.mxu0 0
    %576 = vmatpush2.bf16.msra.mxu0 0
    %577 = vmatprep.subr.bf16.mxu0 0
    %578 = vmatpush2.bf16.msra.mxu0 0
    %579 = vmatprep.mubr.bf16.mxu0 0
    %580 = vmatmul.mubr.bf16.gmra.mxu0 %v386
    %v581 = vpop.f32.mrf.mxu0
    %v582 = vadd.f32 0.0, %v581
    %v583 = vpop.f32.mrf.mxu0
    %v584 = vadd.f32 0.0, %v583
    %v585 = vpop.f32.mrf.mxu0
    %v586 = vpop.f32.mrf.mxu0
    %587 = vdwg.mxu0
    %588 = vmatprep.subr.bf16.mxu0 0
    %589 = vmatpush1.bf16.msra.mxu0 %v522
    %590 = vmatprep.subr.bf16.mxu0 0
    %591 = vmatpush1.bf16.msra.mxu0 %v519
    %592 = vmatprep.subr.bf16.mxu0 0
    %593 = vmatpush1.bf16.msra.mxu0 %v516
    %594 = vmatprep.subr.bf16.mxu0 0
    %595 = vmatpush1.bf16.msra.mxu0 %v513
    %596 = vmatprep.subr.bf16.mxu0 0
    %597 = vmatpush1.bf16.msra.mxu0 %v510
    %598 = vmatprep.subr.bf16.mxu0 0
    %599 = vmatpush1.bf16.msra.mxu0 %v507
    %600 = vmatprep.subr.bf16.mxu0 0
    %601 = vmatpush1.bf16.msra.mxu0 %v504
    %602 = vmatprep.subr.bf16.mxu0 0
    %603 = vmatpush1.bf16.msra.mxu0 %v501
    %604 = vmatprep.subr.bf16.mxu0 0
    %605 = vmatpush2.bf16.msra.mxu0 0
    %606 = vmatprep.subr.bf16.mxu0 0
    %607 = vmatpush2.bf16.msra.mxu0 0
    %608 = vmatprep.subr.bf16.mxu0 0
    %609 = vmatpush2.bf16.msra.mxu0 0
    %610 = vmatprep.subr.bf16.mxu0 0
    %611 = vmatpush2.bf16.msra.mxu0 0
    %612 = vmatprep.subr.bf16.mxu0 0
    %613 = vmatpush2.bf16.msra.mxu0 0
    %614 = vmatprep.subr.bf16.mxu0 0
    %615 = vmatpush2.bf16.msra.mxu0 0
    %616 = vmatprep.subr.bf16.mxu0 0
    %617 = vmatpush2.bf16.msra.mxu0 0
    %618 = vmatprep.subr.bf16.mxu0 0
    %619 = vmatpush2.bf16.msra.mxu0 0
    %620 = vmatprep.mubr.bf16.mxu0 0
    %621 = vmatmul.mubr.bf16.gmra.mxu0 %v386
    %v622 = vpop.f32.mrf.mxu0
    %v623 = vadd.f32 0.0, %v622
    %v624 = vpop.f32.mrf.mxu0
    %v625 = vpop.f32.mrf.mxu0
    %v626 = vpop.f32.mrf.mxu0
    %627 = vdwg.mxu0
    %v628 = vadd.f32 %v340, %v582
    %v629 = vxor.u32 %v628, 2147483648
    %v630 = vmul.f32 %v629, 1.442695
    %v631 = vpow.pop %v630
    %v632 = vadd.f32 %v631, 1.0
    %v633 = vrcp.pop %v632
    %v634 = vmul.f32 1.0, %v633
    %v635 = vadd.f32 %v342, %v584
    %v636 = vxor.u32 %v635, 2147483648
    %v637 = vmul.f32 %v636, 1.442695
    %v638 = vpow.pop %v637
    %v639 = vadd.f32 %v638, 1.0
    %v640 = vrcp.pop %v639
    %v641 = vmul.f32 1.0, %v640
    %v642 = vld [vmem:[%s5] sm:$0x1]
    %v644 = vlaneseq
    %v645 = vshrl.u32 %v644, 7
    %v646 = vsub.s32 0, %v645
    %v647 = vrot.slane %v642, %v646
    %v649 = vadd.f32 %v623, %v647
    %v650 = vmul.f32 %v634, %v649
    %v651 = vadd.f32 %v381, %v650
    %v652 = vtanh.pop %v651
    %v653 = vsub.f32 1.0, %v641
    %v654 = vmul.f32 %v653, %v652
    %v655 = vmul.f32 %v641, %v76
    %v656 = vadd.f32 %v654, %v655
    %657 = vst [vmem:[#allocation10] sm:$0xff] %v656
    // Predicated region
    $region42: #{tpu_custom_call.1} parent=1 // pred_check
      _
    $region43: #{tpu_custom_call.1} parent=1 // pred_check_branch
      %659 = sbr.rel (0) target = $region45
    $region44: #{tpu_custom_call.1} parent=1 // pred_region
      %s661 = ssub.s32 128, 128
      %662 = vsyncadd [#allocation4], %s661
      %s664 = sshll.u32 [#allocation10], 4
      %s665 = int_to_ptr.vmem [resolvable:$true] %s664
      %667 = dma.vmem_to_hbm [thread:$0]  %s665, 128, %s6, [#allocation4]
    $region45: #{tpu_custom_call.1} parent=1 // pred_fallthru
      _
    // Predicated region
    $region46: #{tpu_custom_call.1} parent=1 // pred_check
      _
    $region47: #{tpu_custom_call.1} parent=1 // pred_check_branch
      %669 = sbr.rel (0) target = $region49
    $region48: #{tpu_custom_call.1} parent=1 // pred_region
      %670 = dma.done [#allocation4], 128
    $region49: #{tpu_custom_call.1} parent=1 // pred_fallthru
      _
    %671 = vsyncpa [#allocation3], 1
    %672 = vsyncpa [#allocation6], 1
    %673 = vsyncpa [#allocation9], 1
    %674 = vsyncpa [#allocation4], 1

</llo_original>
